<compile_context>
chip_gen: v5e
topology: v5e:2x2
jax: 0.10.0
libtpu: 0.0.40
codegen_flags: <defaults>
</compile_context>

<pallas_src>
import jax
import jax.numpy as jnp
from jax.experimental import pallas as pl
from jax.experimental.pallas import tpu as pltpu

_LANE = 128   # lane width  (last dim)
_SUB = 8      # f32 sublane (second-last dim)
_VMEM_BUDGET = 32 * 1024 * 1024   # conservative working-set budget (bytes)


def _round_up(x, m):
    return ((x + m - 1) // m) * m


def feature_layer_kernel(x_ref, w1_ref, b1_ref, w2_ref, b2_ref,
                         feat_ref, out_ref):
    # feature = x @ W1 + b1      (W1 already (F, U_pad) — canonical MXU layout)
    feat = jnp.dot(x_ref[...], w1_ref[...],
                   preferred_element_type=jnp.float32) + b1_ref[...]
    feat_ref[...] = feat.astype(feat_ref.dtype)
    # out = relu(feature) @ W2 + b2   (W2 already (U_pad, C_pad))
    hidden = jnp.maximum(feat, 0.0)
    out = jnp.dot(hidden, w2_ref[...],
                  preferred_element_type=jnp.float32) + b2_ref[...]
    out_ref[...] = out.astype(out_ref.dtype)


def feature_layer(x, w1, b1, w2, b2, *, block_b=1024):
    """x: (B, F); w1: (U, F); b1: (U,); w2: (C, U); b2: (C,)  -- PyTorch layout.

    Returns (feature, out) with shapes (B, U), (B, C).
    """
    B, F = x.shape
    U, F1 = w1.shape
    C, U1 = w2.shape
    assert F1 == F and U1 == U

    # Lane-dense padding of the two output feature dims.
    U_pad = _round_up(U, _LANE)
    C_pad = _round_up(C, _LANE)

    # VMEM-aware batch tile: x/feat/out tiles are double-buffered; weights are
    # resident (counted twice to stay conservative).
    weight_bytes = 4 * 2 * (F * U_pad + U_pad * C_pad + U_pad + C_pad)
    bytes_per_row = 4 * 2 * (F + U_pad + C_pad)
    max_tb = max(_SUB, (_VMEM_BUDGET - weight_bytes) // bytes_per_row)
    TB = _round_up(min(block_b, max_tb, _round_up(B, _SUB)), _SUB)
    B_pad = _round_up(B, TB)

    # One-time layout work in the wrapper (weights are small vs. x):
    #   pad to lane-dense sizes + transpose to (in, out).
    x_p = x if B_pad == B else jnp.pad(x, ((0, B_pad - B), (0, 0)))
    w1_p = jnp.pad(w1, ((0, U_pad - U), (0, 0))).T                  # (F, U_pad)
    b1_p = jnp.pad(b1, (0, U_pad - U)).reshape(1, U_pad)
    w2_p = jnp.pad(w2, ((0, C_pad - C), (0, U_pad - U))).T          # (U_pad, C_pad)
    b2_p = jnp.pad(b2, (0, C_pad - C)).reshape(1, C_pad)

    grid = (B_pad // TB,)

    feat_p, out_p = pl.pallas_call(
        feature_layer_kernel,
        out_shape=(
            jax.ShapeDtypeStruct((B_pad, U_pad), jnp.float32),
            jax.ShapeDtypeStruct((B_pad, C_pad), jnp.float32),
        ),
        grid=grid,
        in_specs=[
            pl.BlockSpec((TB, F), lambda i: (i, 0)),          # x: tiled over batch
            pl.BlockSpec((F, U_pad), lambda i: (0, 0)),       # W1: VMEM-resident
            pl.BlockSpec((1, U_pad), lambda i: (0, 0)),       # b1
            pl.BlockSpec((U_pad, C_pad), lambda i: (0, 0)),   # W2
            pl.BlockSpec((1, C_pad), lambda i: (0, 0)),       # b2
        ],
        out_specs=(
            pl.BlockSpec((TB, U_pad), lambda i: (i, 0)),
            pl.BlockSpec((TB, C_pad), lambda i: (i, 0)),
        ),
        compiler_params=pltpu.CompilerParams(
            dimension_semantics=("parallel",),        # megacore-shard the batch
            vmem_limit_bytes=48 * 1024 * 1024,        # headroom under v7x 64 MiB
        ),
    )(x_p, w1_p, b1_p, w2_p, b2_p)

    return feat_p[:B, :U], out_p[:B, :C]


def _init_linear(key, out_dim, in_dim):
    """Deterministic PyTorch-style init: U(-1/sqrt(fan_in), 1/sqrt(fan_in))."""
    kw, kb = jax.random.split(key)
    bound = 1.0 / jnp.sqrt(jnp.asarray(in_dim, jnp.float32))
    w = jax.random.uniform(kw, (out_dim, in_dim), jnp.float32, -bound, bound)
    b = jax.random.uniform(kb, (out_dim,), jnp.float32, -bound, bound)
    return w, b


if __name__ == "__main__":
    # Small shapes consistent with the module (feature_num -> uap_num -> class_num).
    # uap_num=50 / class_num=10 match the module defaults and exercise the
    # lane-padding path; feature_num kept small for a quick demo.
    batch, feature_num, uap_num, class_num = 8, 128, 50, 10

    key = jax.random.PRNGKey(0)
    kx, k1, k2 = jax.random.split(key, 3)

    x = jax.random.normal(kx, (batch, feature_num), jnp.float32)
    w1, b1 = _init_linear(k1, uap_num, feature_num)       # uap_linear
    w2, b2 = _init_linear(k2, class_num, uap_num)         # uap_classifier

    feat, out = feature_layer(x, w1, b1, w2, b2)
    feat, out = jax.block_until_ready(feat), jax.block_until_ready(out)

    # Pure-JAX reference check.
    feat_ref = x @ w1.T + b1
    out_ref = jnp.maximum(feat_ref, 0.0) @ w2.T + b2
    assert feat.shape == (batch, uap_num) and out.shape == (batch, class_num)
    assert jnp.allclose(feat, feat_ref, atol=1e-4, rtol=1e-5)
    assert jnp.allclose(out, out_ref, atol=1e-4, rtol=1e-5)

    print("KERNEL_OK")
</pallas_src>

<mosaic_0001>
module attributes {stable_mosaic.version = 11 : i64} {
  func.func @feature_layer_kernel(%arg0: i32, %arg1: memref<8x128xf32, #tpu.memory_space<vmem>>, %arg2: memref<128x128xf32, #tpu.memory_space<vmem>>, %arg3: memref<1x128xf32, #tpu.memory_space<vmem>>, %arg4: memref<128x128xf32, #tpu.memory_space<vmem>>, %arg5: memref<1x128xf32, #tpu.memory_space<vmem>>, %arg6: memref<8x128xf32, #tpu.memory_space<vmem>>, %arg7: memref<8x128xf32, #tpu.memory_space<vmem>>) attributes {dimension_semantics = [#tpu.dimension_semantics<parallel>], iteration_bounds = array<i64: 1>, scalar_prefetch = 0 : i64, scratch_operands = 0 : i64, tpu.core_type = #tpu.core_type<tc>, window_params = [{transform_indices = @transform_0, window_bounds = array<i64: 8, 128>}, {pipeline_mode = #tpu.pipeline_mode<synchronous>, transform_indices = @transform_1, window_bounds = array<i64: 128, 128>}, {pipeline_mode = #tpu.pipeline_mode<synchronous>, transform_indices = @transform_2, window_bounds = array<i64: 1, 128>}, {pipeline_mode = #tpu.pipeline_mode<synchronous>, transform_indices = @transform_3, window_bounds = array<i64: 128, 128>}, {pipeline_mode = #tpu.pipeline_mode<synchronous>, transform_indices = @transform_4, window_bounds = array<i64: 1, 128>}, {transform_indices = @transform_5, window_bounds = array<i64: 8, 128>}, {transform_indices = @transform_6, window_bounds = array<i64: 8, 128>}]} {
    %c0 = arith.constant 0 : index
    %c0_0 = arith.constant 0 : index
    %0 = vector.load %arg1[%c0, %c0_0] : memref<8x128xf32, #tpu.memory_space<vmem>>, vector<8x128xf32>
    %c0_1 = arith.constant 0 : index
    %c0_2 = arith.constant 0 : index
    %1 = vector.load %arg2[%c0_1, %c0_2] : memref<128x128xf32, #tpu.memory_space<vmem>>, vector<128x128xf32>
    %cst = arith.constant dense<0.000000e+00> : vector<8x128xf32>
    %2 = tpu.matmul %0, %1, %cst {dimension_numbers = #tpu.dot_dimension_numbers<[1], [0], [0], [1], [0, 0, 1, 1], [], []>} : vector<8x128xf32>, vector<128x128xf32>, vector<8x128xf32> -> vector<8x128xf32>
    %c0_3 = arith.constant 0 : index
    %c0_4 = arith.constant 0 : index
    %3 = vector.load %arg3[%c0_3, %c0_4] : memref<1x128xf32, #tpu.memory_space<vmem>>, vector<1x128xf32>
    %4 = vector.broadcast %3 : vector<1x128xf32> to vector<8x128xf32>
    %5 = arith.addf %2, %4 : vector<8x128xf32>
    %c0_5 = arith.constant 0 : index
    %c0_6 = arith.constant 0 : index
    %6 = vector.load %arg6[%c0_5, %c0_6] : memref<8x128xf32, #tpu.memory_space<vmem>>, vector<8x128xf32>
    tpu.vector_store %arg6[%c0_5, %c0_6], %5 {strides = array<i32>} : memref<8x128xf32, #tpu.memory_space<vmem>>, vector<8x128xf32>,
    %cst_7 = arith.constant 0.000000e+00 : f32
    %7 = vector.broadcast %cst_7 : f32 to vector<8x128xf32>
    %8 = arith.maximumf %5, %7 : vector<8x128xf32>
    %c0_8 = arith.constant 0 : index
    %c0_9 = arith.constant 0 : index
    %9 = vector.load %arg4[%c0_8, %c0_9] : memref<128x128xf32, #tpu.memory_space<vmem>>, vector<128x128xf32>
    %cst_10 = arith.constant dense<0.000000e+00> : vector<8x128xf32>
    %10 = tpu.matmul %8, %9, %cst_10 {dimension_numbers = #tpu.dot_dimension_numbers<[1], [0], [0], [1], [0, 0, 1, 1], [], []>} : vector<8x128xf32>, vector<128x128xf32>, vector<8x128xf32> -> vector<8x128xf32>
    %c0_11 = arith.constant 0 : index
    %c0_12 = arith.constant 0 : index
    %11 = vector.load %arg5[%c0_11, %c0_12] : memref<1x128xf32, #tpu.memory_space<vmem>>, vector<1x128xf32>
    %12 = vector.broadcast %11 : vector<1x128xf32> to vector<8x128xf32>
    %13 = arith.addf %10, %12 : vector<8x128xf32>
    %c0_13 = arith.constant 0 : index
    %c0_14 = arith.constant 0 : index
    %14 = vector.load %arg7[%c0_13, %c0_14] : memref<8x128xf32, #tpu.memory_space<vmem>>, vector<8x128xf32>
    tpu.vector_store %arg7[%c0_13, %c0_14], %13 {strides = array<i32>} : memref<8x128xf32, #tpu.memory_space<vmem>>, vector<8x128xf32>,
    return
  }
  func.func @transform_0(%arg0: i32) -> (i32, i32) {
    %c0_i32 = arith.constant 0 : i32
    %c0_i32_0 = arith.constant 0 : i32
    return %arg0, %c0_i32 : i32, i32
  }
  func.func @transform_1(%arg0: i32) -> (i32, i32) {
    %c0_i32 = arith.constant 0 : i32
    %c0_i32_0 = arith.constant 0 : i32
    %c0_i32_1 = arith.constant 0 : i32
    return %c0_i32, %c0_i32_0 : i32, i32
  }
  func.func @transform_2(%arg0: i32) -> (i32, i32) {
    %c0_i32 = arith.constant 0 : i32
    %c0_i32_0 = arith.constant 0 : i32
    %c0_i32_1 = arith.constant 0 : i32
    return %c0_i32, %c0_i32_0 : i32, i32
  }
  func.func @transform_3(%arg0: i32) -> (i32, i32) {
    %c0_i32 = arith.constant 0 : i32
    %c0_i32_0 = arith.constant 0 : i32
    %c0_i32_1 = arith.constant 0 : i32
    return %c0_i32, %c0_i32_0 : i32, i32
  }
  func.func @transform_4(%arg0: i32) -> (i32, i32) {
    %c0_i32 = arith.constant 0 : i32
    %c0_i32_0 = arith.constant 0 : i32
    %c0_i32_1 = arith.constant 0 : i32
    return %c0_i32, %c0_i32_0 : i32, i32
  }
  func.func @transform_5(%arg0: i32) -> (i32, i32) {
    %c0_i32 = arith.constant 0 : i32
    %c0_i32_0 = arith.constant 0 : i32
    return %arg0, %c0_i32 : i32, i32
  }
  func.func @transform_6(%arg0: i32) -> (i32, i32) {
    %c0_i32 = arith.constant 0 : i32
    %c0_i32_0 = arith.constant 0 : i32
    return %arg0, %c0_i32 : i32, i32
  }
}

</mosaic_0001>

<llo_original>
// kernel: tpu_custom_call.1
$region0: #{tpu_custom_call.1}
  #allocation0 [shape = 'u32[]', space=smem, size = 0x4, offset = 0x4, fixed_abs, tag = 'smem constant byte address 0x4 - core index']
  #allocation1 [shape = 'u32[72,128]{1,0:T(1,128)}', space=vmem, size = 0x9000, scoped, tag = 'internal scratch']
  %s0 = inlined_call_operand.hbm [shape: f32[8,128], index: 0, kind: input, shape index: {}]
  %s1 = inlined_call_operand.hbm [shape: f32[128,128], index: 1, kind: input, shape index: {}]
  %s2 = inlined_call_operand.vmem [shape: f32[1,128], index: 2, kind: input, shape index: {}]
  %s3 = inlined_call_operand.hbm [shape: f32[128,128], index: 3, kind: input, shape index: {}]
  %s4 = inlined_call_operand.vmem [shape: f32[1,128], index: 4, kind: input, shape index: {}]
  %s5 = inlined_call_operand.hbm [shape: f32[8,128], index: 5, kind: output, shape index: {0}]
  %s6 = inlined_call_operand.hbm [shape: f32[8,128], index: 6, kind: output, shape index: {1}]
  %7 = xla_tuple %s5, %s6
  %s8 = sld [smem:[#allocation0]]
  $region50: #{tpu_custom_call.1} parent=0
    _
  %s10 = ssub.s32 1, %s8
  %s11 = scalar_select 0, %s10, %s8
  $region1: #{tpu_custom_call.1} parent=0
    #allocation2 [shape = 'u8[4096]{0}', space=vmem, size = 0x1000, scoped, tag = 'input window, operand 0, single buffered']
    #allocation3 [shape = 's32[1]{0}', space=sflag, size = 0x4, scoped, tag = 'scoped memory for tpu_custom_call.1']
    #allocation4 [shape = 's32[1]{0}', space=sflag, size = 0x4, scoped, tag = 'scoped memory for tpu_custom_call.1']
    #allocation5 [shape = 'u8[65536]{0}', space=vmem, size = 0x10000, scoped, tag = 'input window, operand 1, single buffered']
    #allocation6 [shape = 's32[1]{0}', space=sflag, size = 0x4, scoped, tag = 'scoped memory for tpu_custom_call.1']
    #allocation7 [shape = 'u8[65536]{0}', space=vmem, size = 0x10000, scoped, tag = 'input window, operand 3, single buffered']
    #allocation8 [shape = 'u8[4096]{0}', space=vmem, size = 0x1000, scoped, tag = 'output window, operand 0, single buffered']
    #allocation9 [shape = 'u8[4096]{0}', space=vmem, size = 0x1000, scoped, tag = 'output window, operand 1, single buffered']
    #allocation10 [shape = 's32[1]{0}', space=sflag, size = 0x4, scoped, tag = 'scoped memory for tpu_custom_call.1']
    %12 = vsyncpa [#allocation3], 0
    %13 = vsyncpa [#allocation6], 0
    %14 = vsyncpa [#allocation4], 0
    %15 = vsyncpa [#allocation10], 0
    // Predicated region
    $region2: #{tpu_custom_call.1} parent=1 // pred_check
      _
    $region3: #{tpu_custom_call.1} parent=1 // pred_check_branch
      %17 = sbr.rel (0) target = $region5
    $region4: #{tpu_custom_call.1} parent=1 // pred_region
      %19 = vsyncadd [#allocation3], 0
      %s21 = sshll.u32 %s0, 4
      %s22 = int_to_ptr.hbm [resolvable:$true] %s21
      %s23 = sshll.u32 [#allocation2], 4
      %s24 = int_to_ptr.vmem [resolvable:$true] %s23
      %26 = dma.hbm_to_vmem [thread:$0]  %s22, 128, %s24, [#allocation3]
    $region5: #{tpu_custom_call.1} parent=1 // pred_fallthru
      _
    // Predicated region
    $region6: #{tpu_custom_call.1} parent=1 // pred_check
      _
    $region7: #{tpu_custom_call.1} parent=1 // pred_check_branch
      %28 = sbr.rel (0) target = $region9
    $region8: #{tpu_custom_call.1} parent=1 // pred_region
      %30 = vsyncadd [#allocation6], 0
      %s31 = sshll.u32 %s1, 4
      %s32 = int_to_ptr.hbm [resolvable:$true] %s31
      %s33 = sshll.u32 [#allocation5], 4
      %s34 = int_to_ptr.vmem [resolvable:$true] %s33
      %39 = dma.hbm_to_vmem [thread:$0]  %s32, 2048, %s34, [#allocation6], 128, 128, 8
    $region9: #{tpu_custom_call.1} parent=1 // pred_fallthru
      _
    // Predicated region
    $region10: #{tpu_custom_call.1} parent=1 // pred_check
      _
    $region11: #{tpu_custom_call.1} parent=1 // pred_check_branch
      %41 = sbr.rel (0) target = $region13
    $region12: #{tpu_custom_call.1} parent=1 // pred_region
      _
    $region13: #{tpu_custom_call.1} parent=1 // pred_fallthru
      _
    // Predicated region
    $region14: #{tpu_custom_call.1} parent=1 // pred_check
      _
    $region15: #{tpu_custom_call.1} parent=1 // pred_check_branch
      %43 = sbr.rel (0) target = $region17
    $region16: #{tpu_custom_call.1} parent=1 // pred_region
      %45 = vsyncadd [#allocation6], 0
      %s46 = sshll.u32 %s3, 4
      %s47 = int_to_ptr.hbm [resolvable:$true] %s46
      %s48 = sshll.u32 [#allocation7], 4
      %s49 = int_to_ptr.vmem [resolvable:$true] %s48
      %54 = dma.hbm_to_vmem [thread:$0]  %s47, 2048, %s49, [#allocation6], 128, 128, 8
    $region17: #{tpu_custom_call.1} parent=1 // pred_fallthru
      _
    // Predicated region
    $region18: #{tpu_custom_call.1} parent=1 // pred_check
      _
    $region19: #{tpu_custom_call.1} parent=1 // pred_check_branch
      %56 = sbr.rel (0) target = $region21
    $region20: #{tpu_custom_call.1} parent=1 // pred_region
      _
    $region21: #{tpu_custom_call.1} parent=1 // pred_fallthru
      _
    // Predicated region
    $region22: #{tpu_custom_call.1} parent=1 // pred_check
      _
    $region23: #{tpu_custom_call.1} parent=1 // pred_check_branch
      %58 = sbr.rel (0) target = $region25
    $region24: #{tpu_custom_call.1} parent=1 // pred_region
      %60 = dma.done [#allocation3], 128
    $region25: #{tpu_custom_call.1} parent=1 // pred_fallthru
      _
    // Predicated region
    $region26: #{tpu_custom_call.1} parent=1 // pred_check
      _
    $region27: #{tpu_custom_call.1} parent=1 // pred_check_branch
      %62 = sbr.rel (0) target = $region29
    $region28: #{tpu_custom_call.1} parent=1 // pred_region
      %64 = dma.done [#allocation6], 2048
    $region29: #{tpu_custom_call.1} parent=1 // pred_fallthru
      _
    // Predicated region
    $region30: #{tpu_custom_call.1} parent=1 // pred_check
      _
    $region31: #{tpu_custom_call.1} parent=1 // pred_check_branch
      %66 = sbr.rel (0) target = $region33
    $region32: #{tpu_custom_call.1} parent=1 // pred_region
      %68 = dma.done [#allocation6], 2048
    $region33: #{tpu_custom_call.1} parent=1 // pred_fallthru
      _
    %v69 = vld [vmem:[#allocation2] sm:$0xff]
    %v70 = vld [vmem:[#allocation5] sm:$0xff]
    %v71 = vld [vmem:[#allocation5 + $0x8] sm:$0xff]
    %v72 = vld [vmem:[#allocation5 + $0x10] sm:$0xff]
    %v73 = vld [vmem:[#allocation5 + $0x18] sm:$0xff]
    %v74 = vld [vmem:[#allocation5 + $0x20] sm:$0xff]
    %v75 = vld [vmem:[#allocation5 + $0x28] sm:$0xff]
    %v76 = vld [vmem:[#allocation5 + $0x30] sm:$0xff]
    %v77 = vld [vmem:[#allocation5 + $0x38] sm:$0xff]
    %v78 = vld [vmem:[#allocation5 + $0x40] sm:$0xff]
    %v79 = vld [vmem:[#allocation5 + $0x48] sm:$0xff]
    %v80 = vld [vmem:[#allocation5 + $0x50] sm:$0xff]
    %v81 = vld [vmem:[#allocation5 + $0x58] sm:$0xff]
    %v82 = vld [vmem:[#allocation5 + $0x60] sm:$0xff]
    %v83 = vld [vmem:[#allocation5 + $0x68] sm:$0xff]
    %v84 = vld [vmem:[#allocation5 + $0x70] sm:$0xff]
    %v85 = vld [vmem:[#allocation5 + $0x78] sm:$0xff]
    %v86 = vld [vmem:[%s2] sm:$0x1]
    %v88 = vperm.slane %v86, 0
    %90 = vmatpush.msra.mxu0 %v85
    %91 = vmatpush.msra.mxu0 %v84
    %92 = vmatpush.msra.mxu0 %v83
    %93 = vmatpush.msra.mxu0 %v82
    %94 = vmatpush.msra.mxu0 %v81
    %95 = vmatpush.msra.mxu0 %v80
    %96 = vmatpush.msra.mxu0 %v79
    %97 = vmatpush.msra.mxu0 %v78
    %98 = vmatpush.msra.mxu0 %v77
    %99 = vmatpush.msra.mxu0 %v76
    %100 = vmatpush.msra.mxu0 %v75
    %101 = vmatpush.msra.mxu0 %v74
    %102 = vmatpush.msra.mxu0 %v73
    %103 = vmatpush.msra.mxu0 %v72
    %104 = vmatpush.msra.mxu0 %v71
    %105 = vmatpush.msra.mxu0 %v70
    %106 = vmatmul.f32.gmra.mxu0 %v69
    %v107 = vpop.f32.mrf.mxu0
    %v108 = vadd.f32 %v88, %v107
    %109 = vdwg.mxu0
    %110 = vst [vmem:[#allocation8] sm:$0xff] %v108
    %v111 = vmax.f32 %v108, 0.0
    %v112 = vld [vmem:[#allocation7] sm:$0xff]
    %v113 = vld [vmem:[#allocation7 + $0x8] sm:$0xff]
    %v114 = vld [vmem:[#allocation7 + $0x10] sm:$0xff]
    %v115 = vld [vmem:[#allocation7 + $0x18] sm:$0xff]
    %v116 = vld [vmem:[#allocation7 + $0x20] sm:$0xff]
    %v117 = vld [vmem:[#allocation7 + $0x28] sm:$0xff]
    %v118 = vld [vmem:[#allocation7 + $0x30] sm:$0xff]
    %v119 = vld [vmem:[#allocation7 + $0x38] sm:$0xff]
    %v120 = vld [vmem:[#allocation7 + $0x40] sm:$0xff]
    %v121 = vld [vmem:[#allocation7 + $0x48] sm:$0xff]
    %v122 = vld [vmem:[#allocation7 + $0x50] sm:$0xff]
    %v123 = vld [vmem:[#allocation7 + $0x58] sm:$0xff]
    %v124 = vld [vmem:[#allocation7 + $0x60] sm:$0xff]
    %v125 = vld [vmem:[#allocation7 + $0x68] sm:$0xff]
    %v126 = vld [vmem:[#allocation7 + $0x70] sm:$0xff]
    %v127 = vld [vmem:[#allocation7 + $0x78] sm:$0xff]
    %v128 = vld [vmem:[%s4] sm:$0x1]
    %v130 = vperm.slane %v128, 0
    %132 = vmatpush.msra.mxu0 %v127
    %133 = vmatpush.msra.mxu0 %v126
    %134 = vmatpush.msra.mxu0 %v125
    %135 = vmatpush.msra.mxu0 %v124
    %136 = vmatpush.msra.mxu0 %v123
    %137 = vmatpush.msra.mxu0 %v122
    %138 = vmatpush.msra.mxu0 %v121
    %139 = vmatpush.msra.mxu0 %v120
    %140 = vmatpush.msra.mxu0 %v119
    %141 = vmatpush.msra.mxu0 %v118
    %142 = vmatpush.msra.mxu0 %v117
    %143 = vmatpush.msra.mxu0 %v116
    %144 = vmatpush.msra.mxu0 %v115
    %145 = vmatpush.msra.mxu0 %v114
    %146 = vmatpush.msra.mxu0 %v113
    %147 = vmatpush.msra.mxu0 %v112
    %148 = vmatmul.f32.gmra.mxu0 %v111
    %v149 = vpop.f32.mrf.mxu0
    %v150 = vadd.f32 %v130, %v149
    %151 = vdwg.mxu0
    %152 = vst [vmem:[#allocation9] sm:$0xff] %v150
    // Predicated region
    $region34: #{tpu_custom_call.1} parent=1 // pred_check
      _
    $region35: #{tpu_custom_call.1} parent=1 // pred_check_branch
      %154 = sbr.rel (0) target = $region37
    $region36: #{tpu_custom_call.1} parent=1 // pred_region
      %156 = vsyncadd [#allocation4], 0
      %s158 = sshll.u32 [#allocation8], 4
      %s159 = int_to_ptr.vmem [resolvable:$true] %s158
      %s160 = sshll.u32 %s5, 4
      %s161 = int_to_ptr.hbm [resolvable:$true] %s160
      %163 = dma.vmem_to_hbm [thread:$0]  %s159, 128, %s161, [#allocation4]
    $region37: #{tpu_custom_call.1} parent=1 // pred_fallthru
      _
    // Predicated region
    $region38: #{tpu_custom_call.1} parent=1 // pred_check
      _
    $region39: #{tpu_custom_call.1} parent=1 // pred_check_branch
      %165 = sbr.rel (0) target = $region41
    $region40: #{tpu_custom_call.1} parent=1 // pred_region
      %167 = vsyncadd [#allocation10], 0
      %s169 = sshll.u32 [#allocation9], 4
      %s170 = int_to_ptr.vmem [resolvable:$true] %s169
      %s171 = sshll.u32 %s6, 4
      %s172 = int_to_ptr.hbm [resolvable:$true] %s171
      %174 = dma.vmem_to_hbm [thread:$0]  %s170, 128, %s172, [#allocation10]
    $region41: #{tpu_custom_call.1} parent=1 // pred_fallthru
      _
    // Predicated region
    $region42: #{tpu_custom_call.1} parent=1 // pred_check
      _
    $region43: #{tpu_custom_call.1} parent=1 // pred_check_branch
      %176 = sbr.rel (0) target = $region45
    $region44: #{tpu_custom_call.1} parent=1 // pred_region
      %178 = dma.done [#allocation4], 128
    $region45: #{tpu_custom_call.1} parent=1 // pred_fallthru
      _
    // Predicated region
    $region46: #{tpu_custom_call.1} parent=1 // pred_check
      _
    $region47: #{tpu_custom_call.1} parent=1 // pred_check_branch
      %180 = sbr.rel (0) target = $region49
    $region48: #{tpu_custom_call.1} parent=1 // pred_region
      %182 = dma.done [#allocation10], 128
    $region49: #{tpu_custom_call.1} parent=1 // pred_fallthru
      _
    %183 = vsyncpa [#allocation3], 1
    %184 = vsyncpa [#allocation6], 1
    %185 = vsyncpa [#allocation4], 1
    %186 = vsyncpa [#allocation10], 1

</llo_original>
